<compile_context>
chip_gen: v7x
topology: tpu7x:2x2x1
jax: 0.10.0
libtpu: 0.0.40
codegen_flags: <defaults>
</compile_context>

<pallas_src>
import jax
import jax.numpy as jnp
import numpy as np
from jax.experimental import pallas as pl
from jax.experimental.pallas import tpu as pltpu


C_IN = 256                      # channels per feature map (fnet output)
H_FEAT, W_FEAT = 60, 80
HW = H_FEAT * W_FEAT            # 4800 flattened spatial positions (on lanes)
POOL_H, POOL_W = 30, 40
C_OUT = 32                      # 16 position + 16 orientation conv channels
C_HEAD = C_OUT // 2             # 16 channels per head
FC_IN = 16 * POOL_H * POOL_W    # 19200
HIDDEN = 256
OUT_PAD = 4                     # fc2 outputs padded to 4 (pos head uses cols 0..2)


# ----------------------------- kernels --------------------------------------

def normalize_kernel(img_ref, out_ref):
    # image = 2 * (image / 255.0) - 1.0
    out_ref[...] = 2.0 * (img_ref[...] * (1.0 / 255.0)) - 1.0


def conv1x1_kernel(f1_ref, f2_ref, w1_ref, w2_ref, b_ref, out_ref):
    """One head (16 channels) of the 1x1 conv over the concatenated feature maps.

    f1_ref/f2_ref : (1, 256, 4800) bf16  full-channel feature block, spatial on lanes
    w1_ref/w2_ref : (16, 256)      bf16  conv-weight slices (fmap1 / fmap2 halves)
    b_ref         : (16, 1)        f32   conv bias slice
    out_ref       : (1, 16, 4800)  f32
    """
    # Accumulate directly into the output block (no (16,4800) f32 temporary).
    out_ref[0] = jnp.dot(w1_ref[...], f1_ref[0],
                         preferred_element_type=jnp.float32) + b_ref[...]
    out_ref[0] += jnp.dot(w2_ref[...], f2_ref[0],
                          preferred_element_type=jnp.float32)


def fc_heads_kernel(x_ref, w1_ref, b1_ref, w2_ref, b2_ref, out_ref, acc_ref):
    """out[h] = relu(x[h] @ W1[h] + b1[h]) @ W2[h] + b2[h], heads h = {pos, orient}.

    grid = (2 heads ["parallel"], FC_IN // tk ["arbitrary" reduction]).
    """
    k = pl.program_id(1)

    @pl.when(k == 0)
    def _():
        acc_ref[...] = jnp.zeros_like(acc_ref)

    acc_ref[...] += jnp.dot(x_ref[0], w1_ref[0],
                            preferred_element_type=jnp.float32)

    @pl.when(k == pl.num_programs(1) - 1)
    def _():
        h = jnp.maximum(acc_ref[...] + b1_ref[0], 0.0)
        out_ref[0] = (jnp.dot(h, w2_ref[0], preferred_element_type=jnp.float32)
                      + b2_ref[0]).astype(out_ref.dtype)


# ----------------------------- wrappers --------------------------------------

def normalize_image(img):
    """Tiled, lane-dense normalization.  For production 480x640 inputs the last
    dim is 640 (= 5*128) and the row axis is tiled into ~1 MiB blocks."""
    orig_shape = img.shape
    w = int(orig_shape[-1])
    rows = int(np.prod(orig_shape[:-1]))
    x2 = img.reshape(rows, w)

    # Largest row tile that divides `rows`, is a multiple of 8, and keeps the
    # block <= ~1 MiB; fall back to the full array (always a legal block).
    target = max(8, (1 << 20) // max(w * 4, 1))
    tile = rows
    for t in range(min(rows, target), 0, -1):
        if rows % t == 0 and (t % 8 == 0 or t == rows):
            tile = t
            break

    out = pl.pallas_call(
        normalize_kernel,
        out_shape=jax.ShapeDtypeStruct((rows, w), jnp.float32),
        grid=(rows // tile,),
        in_specs=[pl.BlockSpec((tile, w), lambda i: (i, 0))],
        out_specs=pl.BlockSpec((tile, w), lambda i: (i, 0)),
    )(x2)
    return out.reshape(orig_shape)


def conv1x1(f1, f2, wc1, wc2, bc):
    """f1, f2: (B, 256, 4800) bf16.  Returns the pre-pool conv output (B, 32, 4800) f32."""
    B = f1.shape[0]
    return pl.pallas_call(
        conv1x1_kernel,
        out_shape=jax.ShapeDtypeStruct((B, C_OUT, HW), jnp.float32),
        grid_spec=pltpu.PrefetchScalarGridSpec(
            num_scalar_prefetch=0,
            # head axis innermost: feature blocks keep the same block index across
            # both heads -> DMA'd once per batch element; head axis is "parallel"
            # so both v7x TensorCores work even when B == 1.
            grid=(B, 2),
            in_specs=[
                pl.BlockSpec((1, C_IN, HW), lambda b, h: (b, 0, 0)),
                pl.BlockSpec((1, C_IN, HW), lambda b, h: (b, 0, 0)),
                pl.BlockSpec((C_HEAD, C_IN), lambda b, h: (h, 0)),
                pl.BlockSpec((C_HEAD, C_IN), lambda b, h: (h, 0)),
                pl.BlockSpec((C_HEAD, 1), lambda b, h: (h, 0)),
            ],
            out_specs=pl.BlockSpec((1, C_HEAD, HW), lambda b, h: (b, h, 0)),
        ),
        compiler_params=pltpu.CompilerParams(
            dimension_semantics=("parallel", "parallel"),
            # bf16 feature blocks: 2 x (2 x 2.34 MiB) double-buffered inputs
            # + 2 x 0.29 MiB output + small weights ~= 10 MiB; 24 MiB gives
            # headroom and is well under v7x's 64 MiB physical VMEM.
            vmem_limit_bytes=24 * 1024 * 1024,
        ),
    )(f1, f2, wc1, wc2, bc)


def fc_heads(x, w1, b1, w2, b2, *, tk=6400):
    """x: (2, B, 19200) bf16; w1: (2, 19200, 256) bf16; returns (2, B, 4) f32."""
    _, B, K = x.shape
    assert K % tk == 0 and tk % 128 == 0
    nk = K // tk

    w1_idx = lambda h, k: (h, k, 0)
    w1_spec = pl.BlockSpec((1, tk, HIDDEN), w1_idx)
    if hasattr(pl, "Buffered"):
        try:
            # 3-deep buffering on the streamed FC1 weights: the kernel is
            # back-to-back ~3 MiB weight DMAs with ~zero compute per step.
            w1_spec = pl.BlockSpec((1, tk, HIDDEN), w1_idx,
                                   pipeline_mode=pl.Buffered(3))
        except TypeError:
            pass  # older jax without pipeline_mode on BlockSpec

    return pl.pallas_call(
        fc_heads_kernel,
        out_shape=jax.ShapeDtypeStruct((2, B, OUT_PAD), jnp.float32),
        grid_spec=pltpu.PrefetchScalarGridSpec(
            num_scalar_prefetch=0,
            grid=(2, nk),
            in_specs=[
                pl.BlockSpec((1, B, tk), lambda h, k: (h, 0, k)),
                w1_spec,
                pl.BlockSpec((1, 1, HIDDEN), lambda h, k: (h, 0, 0)),
                pl.BlockSpec((1, HIDDEN, OUT_PAD), lambda h, k: (h, 0, 0)),
                pl.BlockSpec((1, 1, OUT_PAD), lambda h, k: (h, 0, 0)),
            ],
            out_specs=pl.BlockSpec((1, B, OUT_PAD), lambda h, k: (h, 0, 0)),
            scratch_shapes=[pltpu.VMEM((B, HIDDEN), jnp.float32)],
        ),
        compiler_params=pltpu.CompilerParams(
            dimension_semantics=("parallel", "arbitrary"),
            # 3 x 3.13 MiB w1 buffers + small x/out blocks ~= 10 MiB; explicit
            # limit because v5e's default scoped VMEM is only 16 MiB.
            vmem_limit_bytes=24 * 1024 * 1024,
        ),
    )(x, w1, b1, w2, b2)


# ----------------------------- model glue -------------------------------------

def prepare_params(params):
    """One-time (model-load) weight prep: bf16 storage for the streamed weights,
    head stacking, conv-weight split along the fmap1/fmap2 channel halves,
    fc2 output padding 3 -> 4 (padded weight/bias columns are zero by
    construction via jnp.pad; pos head reads only cols 0..2)."""
    wc = jnp.concatenate([params["conv_pos_w"], params["conv_ori_w"]], axis=0)   # (32, 512)
    bc = jnp.concatenate([params["conv_pos_b"], params["conv_ori_b"]], axis=0)   # (32,)
    w2_pos = jnp.pad(params["fc2_pos_w"], ((0, 0), (0, OUT_PAD - 3)))
    b2_pos = jnp.pad(params["fc2_pos_b"], (0, OUT_PAD - 3))
    return dict(
        wc1=wc[:, :C_IN].astype(jnp.bfloat16),
        wc2=wc[:, C_IN:].astype(jnp.bfloat16),
        bc=bc.reshape(C_OUT, 1).astype(jnp.float32),
        w1=jnp.stack([params["fc1_pos_w"], params["fc1_ori_w"]]).astype(jnp.bfloat16),
        b1=jnp.stack([params["fc1_pos_b"], params["fc1_ori_b"]]).reshape(2, 1, HIDDEN),
        w2=jnp.stack([w2_pos, params["fc2_ori_w"]]),                              # (2, 256, 4)
        b2=jnp.stack([b2_pos, params["fc2_ori_b"]]).reshape(2, 1, OUT_PAD),
    )


def visual_odometry_forward(fmap1, fmap2, kparams):
    """Head of VisualOdometry.forward, starting from the fnet feature maps.

    # TODO(synk): image normalization (see normalize_image) feeds self.fnet
    # (utils.BasicConvEncoder + utils.POLAUpdate), which depends on the external
    # `utils` module; fmap1/fmap2 are supplied directly with fnet's output shape.
    """
    B = fmap1.shape[0]
    # bf16-at-rest features: fnet should emit bf16 directly, in which case these
    # casts are no-ops.  Reshapes are free collapses of contiguous trailing dims.
    f1 = fmap1.reshape(B, C_IN, HW).astype(jnp.bfloat16)
    f2 = fmap2.reshape(B, C_IN, HW).astype(jnp.bfloat16)

    conv_out = conv1x1(f1, f2, kparams["wc1"], kparams["wc2"], kparams["bc"])    # (B,32,4800) f32

    # AdaptiveMaxPool2d((30,40)) on 60x80 == non-overlapping 2x2 max pool.
    # Plain-JAX glue on the tiny (B,32,4800) = 1.2 MB tensor.
    z = conv_out.reshape(B, C_OUT, POOL_H, 2, POOL_W, 2)
    pooled = jnp.max(z, axis=(3, 5))                                             # (B,32,30,40)
    pos_flat = pooled[:, :C_HEAD].reshape(B, FC_IN)   # flatten order (c,h,w) == torch .view
    ori_flat = pooled[:, C_HEAD:].reshape(B, FC_IN)
    x = jnp.stack([pos_flat, ori_flat], axis=0).astype(jnp.bfloat16)             # (2,B,19200)

    heads = fc_heads(x, kparams["w1"], kparams["b1"], kparams["w2"], kparams["b2"])
    pos = heads[0][:, :3]
    orient = heads[1]
    return jnp.concatenate([pos, orient], axis=1)                                # (B, 7)


# ----------------------------- reference -------------------------------------

def reference_forward(fmap1, fmap2, params):
    hp = jax.lax.Precision.HIGHEST
    feats = jnp.concatenate([fmap1, fmap2], axis=1)

    def head(wc, bc, w1, b1, w2, b2):
        z = jnp.einsum("bchw,oc->bohw", feats, wc, precision=hp) + bc[None, :, None, None]
        B_, O_, H_, W_ = z.shape
        p = jnp.max(z.reshape(B_, O_, H_ // 2, 2, W_ // 2, 2), axis=(3, 5))
        flat = p.reshape(B_, -1)
        h = jnp.maximum(jnp.dot(flat, w1, precision=hp) + b1, 0.0)
        return jnp.dot(h, w2, precision=hp) + b2

    pos = head(params["conv_pos_w"], params["conv_pos_b"],
               params["fc1_pos_w"], params["fc1_pos_b"],
               params["fc2_pos_w"], params["fc2_pos_b"])
    orient = head(params["conv_ori_w"], params["conv_ori_b"],
                  params["fc1_ori_w"], params["fc1_ori_b"],
                  params["fc2_ori_w"], params["fc2_ori_b"])
    return jnp.concatenate([pos, orient], axis=1)


def init_params(key):
    ks = jax.random.split(key, 12)

    def w(k, shape, scale):
        return scale * jax.random.normal(k, shape, dtype=jnp.float32)

    return dict(
        conv_pos_w=w(ks[0], (16, 512), 0.02),     # Conv2d(512,16,1) weight (flattened)
        conv_pos_b=w(ks[1], (16,), 0.02),
        conv_ori_w=w(ks[2], (16, 512), 0.02),
        conv_ori_b=w(ks[3], (16,), 0.02),
        fc1_pos_w=w(ks[4], (19200, 256), 0.005),  # stored transposed vs torch
        fc1_pos_b=w(ks[5], (256,), 0.02),
        fc2_pos_w=w(ks[6], (256, 3), 0.02),
        fc2_pos_b=w(ks[7], (3,), 0.02),
        fc1_ori_w=w(ks[8], (19200, 256), 0.005),
        fc1_ori_b=w(ks[9], (256,), 0.02),
        fc2_ori_w=w(ks[10], (256, 4), 0.02),
        fc2_ori_b=w(ks[11], (4,), 0.02),
    )


if __name__ == "__main__":
    key = jax.random.PRNGKey(0)
    k1, k2, k3, k4, kp = jax.random.split(key, 5)
    B = 2

    # Image-normalization kernel (its consumer, fnet, is external -> tested standalone).
    image1 = jax.random.uniform(k1, (B, 3, 32, 32), jnp.float32, 0.0, 255.0)
    image2 = jax.random.uniform(k2, (B, 3, 32, 32), jnp.float32, 0.0, 255.0)
    img1_n = jax.block_until_ready(normalize_image(image1))
    img2_n = jax.block_until_ready(normalize_image(image2))
    assert bool(jnp.allclose(img1_n, 2.0 * (image1 / 255.0) - 1.0, atol=1e-5))
    assert bool(jnp.allclose(img2_n, 2.0 * (image2 / 255.0) - 1.0, atol=1e-5))

    # fnet output shape for a 480x640 input: (B, 256, 60, 80)
    fmap1 = jax.random.normal(k3, (B, C_IN, H_FEAT, W_FEAT), dtype=jnp.float32)
    fmap2 = jax.random.normal(k4, (B, C_IN, H_FEAT, W_FEAT), dtype=jnp.float32)
    params = init_params(kp)
    kparams = prepare_params(params)              # one-time (model-load) weight prep

    # bf16-at-rest feature maps (in the full model fnet would emit these directly).
    fmap1_b = fmap1.astype(jnp.bfloat16)
    fmap2_b = fmap2.astype(jnp.bfloat16)

    fwd = jax.jit(visual_odometry_forward)
    res = jax.block_until_ready(fwd(fmap1_b, fmap2_b, kparams))
    assert res.shape == (B, 7), res.shape
    assert bool(jnp.all(jnp.isfinite(res)))

    ref = jax.block_until_ready(reference_forward(fmap1, fmap2, params))
    if not np.allclose(np.asarray(res), np.asarray(ref), rtol=5e-2, atol=5e-2):
        err = float(jnp.max(jnp.abs(res - ref)))
        raise AssertionError(f"Pallas result does not match JAX reference (max abs err {err})")
    print("KERNEL_OK")
</pallas_src>

<mosaic_0001>
module attributes {stable_mosaic.version = 11 : i64} {
  func.func @normalize_kernel(%arg0: i32, %arg1: memref<192x32xf32, #tpu.memory_space<vmem>>, %arg2: memref<192x32xf32, #tpu.memory_space<vmem>>) attributes {dimension_semantics = [#tpu.dimension_semantics<arbitrary>], iteration_bounds = array<i64: 1>, scalar_prefetch = 0 : i64, scratch_operands = 0 : i64, tpu.core_type = #tpu.core_type<tc>, window_params = [{transform_indices = @transform_0, window_bounds = array<i64: 192, 32>}, {transform_indices = @transform_1, window_bounds = array<i64: 192, 32>}]} {
    %c0 = arith.constant 0 : index
    %c0_0 = arith.constant 0 : index
    %0 = vector.load %arg1[%c0, %c0_0] : memref<192x32xf32, #tpu.memory_space<vmem>>, vector<192x32xf32>
    %cst = arith.constant 0.00392156886 : f32
    %1 = vector.broadcast %cst : f32 to vector<192x32xf32>
    %2 = arith.mulf %0, %1 : vector<192x32xf32>
    %cst_1 = arith.constant 2.000000e+00 : f32
    %3 = vector.broadcast %cst_1 : f32 to vector<192x32xf32>
    %4 = arith.mulf %3, %2 : vector<192x32xf32>
    %cst_2 = arith.constant 1.000000e+00 : f32
    %5 = vector.broadcast %cst_2 : f32 to vector<192x32xf32>
    %6 = arith.subf %4, %5 : vector<192x32xf32>
    %c0_3 = arith.constant 0 : index
    %c0_4 = arith.constant 0 : index
    %7 = vector.load %arg2[%c0_3, %c0_4] : memref<192x32xf32, #tpu.memory_space<vmem>>, vector<192x32xf32>
    tpu.vector_store %arg2[%c0_3, %c0_4], %6 {strides = array<i32>} : memref<192x32xf32, #tpu.memory_space<vmem>>, vector<192x32xf32>,
    return
  }
  func.func @transform_0(%arg0: i32) -> (i32, i32) {
    %c0_i32 = arith.constant 0 : i32
    %c0_i32_0 = arith.constant 0 : i32
    return %arg0, %c0_i32 : i32, i32
  }
  func.func @transform_1(%arg0: i32) -> (i32, i32) {
    %c0_i32 = arith.constant 0 : i32
    %c0_i32_0 = arith.constant 0 : i32
    return %arg0, %c0_i32 : i32, i32
  }
}

</mosaic_0001>

<llo_original>
// kernel: tpu_custom_call.1
$region0: #{tpu_custom_call.1}
  #allocation0 [shape = 'u32[]', space=smem, size = 0x4, offset = 0x4, fixed_abs, tag = 'smem constant byte address 0x4 - core index']
  #allocation1 [shape = 'u32[144,128]{1,0:T(1,128)}', space=vmem, size = 0x12000, scoped, tag = 'internal scratch']
  %s0 = inlined_call_operand.vmem [shape: f32[192,32], index: 0, kind: input, shape index: {}]
  %s1 = inlined_call_operand.vmem [shape: f32[192,32], index: 1, kind: output, shape index: {}]
  %s2 = sld [smem:[#allocation0]]
  $region14: #{tpu_custom_call.1} parent=0
    _
  %s4 = ssub.s32 1, %s2
  %s5 = scalar_select 0, %s4, %s2
  // Predicated region
  $region2: #{tpu_custom_call.1} parent=0 // pred_check
    _
  $region3: #{tpu_custom_call.1} parent=0 // pred_check_branch
    %7 = sbr.rel (0) target = $region5
  $region4: #{tpu_custom_call.1} parent=0 // pred_region
    _
  $region5: #{tpu_custom_call.1} parent=0 // pred_fallthru
    _
  %v8 = vld [vmem:[%s0] sm:$0xff]
  %v9 = vld [vmem:[%s0 + $0x8] sm:$0xff]
  %v10 = vld [vmem:[%s0 + $0x10] sm:$0xff]
  %v11 = vld [vmem:[%s0 + $0x18] sm:$0xff]
  %v12 = vld [vmem:[%s0 + $0x20] sm:$0xff]
  %v13 = vld [vmem:[%s0 + $0x28] sm:$0xff]
  %v14 = vld [vmem:[%s0 + $0x30] sm:$0xff]
  %v15 = vld [vmem:[%s0 + $0x38] sm:$0xff]
  %v16 = vld [vmem:[%s0 + $0x40] sm:$0xff]
  %v17 = vld [vmem:[%s0 + $0x48] sm:$0xff]
  %v18 = vld [vmem:[%s0 + $0x50] sm:$0xff]
  %v19 = vld [vmem:[%s0 + $0x58] sm:$0xff]
  %v20 = vld [vmem:[%s0 + $0x60] sm:$0xff]
  %v21 = vld [vmem:[%s0 + $0x68] sm:$0xff]
  %v22 = vld [vmem:[%s0 + $0x70] sm:$0xff]
  %v23 = vld [vmem:[%s0 + $0x78] sm:$0xff]
  %v24 = vld [vmem:[%s0 + $0x80] sm:$0xff]
  %v25 = vld [vmem:[%s0 + $0x88] sm:$0xff]
  %v26 = vld [vmem:[%s0 + $0x90] sm:$0xff]
  %v27 = vld [vmem:[%s0 + $0x98] sm:$0xff]
  %v28 = vld [vmem:[%s0 + $0xa0] sm:$0xff]
  %v29 = vld [vmem:[%s0 + $0xa8] sm:$0xff]
  %v30 = vld [vmem:[%s0 + $0xb0] sm:$0xff]
  %v31 = vld [vmem:[%s0 + $0xb8] sm:$0xff]
  %v32 = vmul.f32 %v8, 0.003921569
  %v33 = vmul.f32 %v9, 0.003921569
  %v34 = vmul.f32 %v10, 0.003921569
  %v35 = vmul.f32 %v11, 0.003921569
  %v36 = vmul.f32 %v12, 0.003921569
  %v37 = vmul.f32 %v13, 0.003921569
  %v38 = vmul.f32 %v14, 0.003921569
  %v39 = vmul.f32 %v15, 0.003921569
  %v40 = vmul.f32 %v16, 0.003921569
  %v41 = vmul.f32 %v17, 0.003921569
  %v42 = vmul.f32 %v18, 0.003921569
  %v43 = vmul.f32 %v19, 0.003921569
  %v44 = vmul.f32 %v20, 0.003921569
  %v45 = vmul.f32 %v21, 0.003921569
  %v46 = vmul.f32 %v22, 0.003921569
  %v47 = vmul.f32 %v23, 0.003921569
  %v48 = vmul.f32 %v24, 0.003921569
  %v49 = vmul.f32 %v25, 0.003921569
  %v50 = vmul.f32 %v26, 0.003921569
  %v51 = vmul.f32 %v27, 0.003921569
  %v52 = vmul.f32 %v28, 0.003921569
  %v53 = vmul.f32 %v29, 0.003921569
  %v54 = vmul.f32 %v30, 0.003921569
  %v55 = vmul.f32 %v31, 0.003921569
  %v56 = vmul.f32 %v32, 2.0
  %v57 = vmul.f32 %v33, 2.0
  %v58 = vmul.f32 %v34, 2.0
  %v59 = vmul.f32 %v35, 2.0
  %v60 = vmul.f32 %v36, 2.0
  %v61 = vmul.f32 %v37, 2.0
  %v62 = vmul.f32 %v38, 2.0
  %v63 = vmul.f32 %v39, 2.0
  %v64 = vmul.f32 %v40, 2.0
  %v65 = vmul.f32 %v41, 2.0
  %v66 = vmul.f32 %v42, 2.0
  %v67 = vmul.f32 %v43, 2.0
  %v68 = vmul.f32 %v44, 2.0
  %v69 = vmul.f32 %v45, 2.0
  %v70 = vmul.f32 %v46, 2.0
  %v71 = vmul.f32 %v47, 2.0
  %v72 = vmul.f32 %v48, 2.0
  %v73 = vmul.f32 %v49, 2.0
  %v74 = vmul.f32 %v50, 2.0
  %v75 = vmul.f32 %v51, 2.0
  %v76 = vmul.f32 %v52, 2.0
  %v77 = vmul.f32 %v53, 2.0
  %v78 = vmul.f32 %v54, 2.0
  %v79 = vmul.f32 %v55, 2.0
  %v80 = vsub.f32 %v56, 1.0
  %v81 = vsub.f32 %v57, 1.0
  %v82 = vsub.f32 %v58, 1.0
  %v83 = vsub.f32 %v59, 1.0
  %v84 = vsub.f32 %v60, 1.0
  %v85 = vsub.f32 %v61, 1.0
  %v86 = vsub.f32 %v62, 1.0
  %v87 = vsub.f32 %v63, 1.0
  %v88 = vsub.f32 %v64, 1.0
  %v89 = vsub.f32 %v65, 1.0
  %v90 = vsub.f32 %v66, 1.0
  %v91 = vsub.f32 %v67, 1.0
  %v92 = vsub.f32 %v68, 1.0
  %v93 = vsub.f32 %v69, 1.0
  %v94 = vsub.f32 %v70, 1.0
  %v95 = vsub.f32 %v71, 1.0
  %v96 = vsub.f32 %v72, 1.0
  %v97 = vsub.f32 %v73, 1.0
  %v98 = vsub.f32 %v74, 1.0
  %v99 = vsub.f32 %v75, 1.0
  %v100 = vsub.f32 %v76, 1.0
  %v101 = vsub.f32 %v77, 1.0
  %v102 = vsub.f32 %v78, 1.0
  %v103 = vsub.f32 %v79, 1.0
  %vm104 = vcmask 261120
  %105 = vst.msk [vmem:[%s1] sm:$0xff] %vm104, %v80
  %106 = vst.msk [vmem:[%s1 + $0x8] sm:$0xff] %vm104, %v81
  %107 = vst.msk [vmem:[%s1 + $0x10] sm:$0xff] %vm104, %v82
  %108 = vst.msk [vmem:[%s1 + $0x18] sm:$0xff] %vm104, %v83
  %109 = vst.msk [vmem:[%s1 + $0x20] sm:$0xff] %vm104, %v84
  %110 = vst.msk [vmem:[%s1 + $0x28] sm:$0xff] %vm104, %v85
  %111 = vst.msk [vmem:[%s1 + $0x30] sm:$0xff] %vm104, %v86
  %112 = vst.msk [vmem:[%s1 + $0x38] sm:$0xff] %vm104, %v87
  %113 = vst.msk [vmem:[%s1 + $0x40] sm:$0xff] %vm104, %v88
  %114 = vst.msk [vmem:[%s1 + $0x48] sm:$0xff] %vm104, %v89
  %115 = vst.msk [vmem:[%s1 + $0x50] sm:$0xff] %vm104, %v90
  %116 = vst.msk [vmem:[%s1 + $0x58] sm:$0xff] %vm104, %v91
  %117 = vst.msk [vmem:[%s1 + $0x60] sm:$0xff] %vm104, %v92
  %118 = vst.msk [vmem:[%s1 + $0x68] sm:$0xff] %vm104, %v93
  %119 = vst.msk [vmem:[%s1 + $0x70] sm:$0xff] %vm104, %v94
  %120 = vst.msk [vmem:[%s1 + $0x78] sm:$0xff] %vm104, %v95
  %121 = vst.msk [vmem:[%s1 + $0x80] sm:$0xff] %vm104, %v96
  %122 = vst.msk [vmem:[%s1 + $0x88] sm:$0xff] %vm104, %v97
  %123 = vst.msk [vmem:[%s1 + $0x90] sm:$0xff] %vm104, %v98
  %124 = vst.msk [vmem:[%s1 + $0x98] sm:$0xff] %vm104, %v99
  %125 = vst.msk [vmem:[%s1 + $0xa0] sm:$0xff] %vm104, %v100
  %126 = vst.msk [vmem:[%s1 + $0xa8] sm:$0xff] %vm104, %v101
  %127 = vst.msk [vmem:[%s1 + $0xb0] sm:$0xff] %vm104, %v102
  %128 = vst.msk [vmem:[%s1 + $0xb8] sm:$0xff] %vm104, %v103
  // Predicated region
  $region6: #{tpu_custom_call.1} parent=0 // pred_check
    _
  $region7: #{tpu_custom_call.1} parent=0 // pred_check_branch
    %130 = sbr.rel (0) target = $region9
  $region8: #{tpu_custom_call.1} parent=0 // pred_region
    _
  $region9: #{tpu_custom_call.1} parent=0 // pred_fallthru
    _
  // Predicated region
  $region10: #{tpu_custom_call.1} parent=0 // pred_check
    _
  $region11: #{tpu_custom_call.1} parent=0 // pred_check_branch
    %132 = sbr.rel (0) target = $region13
  $region12: #{tpu_custom_call.1} parent=0 // pred_region
    _
  $region13: #{tpu_custom_call.1} parent=0 // pred_fallthru
    _

</llo_original>
